<compile_context>
chip_gen: v7x
topology: tpu7x:2x2x1
jax: 0.10.0
libtpu: 0.0.40
codegen_flags: <defaults>
</compile_context>

<pallas_src>
import jax
import jax.numpy as jnp
from jax import lax
from jax.experimental import pallas as pl
from jax.experimental.pallas import tpu as pltpu

BN_EPS = 1e-5
# Per-pass VMEM working-set budget (incl. double buffering).  8 MiB fits inside
# the default scoped-VMEM limit of every generation (v5e 16 MiB, v6e/v7x 32 MiB)
# and leaves deep headroom under v7x's 64 MiB physical VMEM.
BAND_VMEM_BUDGET = 8 * 1024 * 1024


def _round_up(x, m):
    return (x + m - 1) // m * m


def _pick_band(hw, bytes_per_row, budget=BAND_VMEM_BUDGET):
    """Largest spatial row band (output pixels per tile) under the VMEM budget.

    Prefers a multiple of 128 that divides hw (lane-dense, unmasked stores);
    falls back to the full spatial extent (block == full dim is always legal).
    """
    cap = max(1, budget // max(1, bytes_per_row))
    if hw <= cap:
        return hw
    d = (cap // 128) * 128
    while d >= 128:
        if hw % d == 0:
            return d
        d -= 128
    return hw  # no suitable 128-multiple divisor; whole rows (still correct)


def _conv_stats_kernel(xcol_ref, w_ref, conv_ref, sum_ref, sq_ref):
    """Pass 1: one folded-tap MXU matmul per band + per-channel partial sums.

    xcol_ref: [1, K_p, band]      bf16  folded 3x3 windows (K = 9*Cin, zero-padded)
    w_ref:    [cout_pad, K_p]     bf16  folded conv weights (resident)
    conv_ref: [1, cout_pad, band] bf16  conv tile, channels on sublanes
    sum_ref:  [1, cout_pad, 1]    f32   this grid step's per-channel sum
    sq_ref:   [1, cout_pad, 1]    f32   this grid step's per-channel sum of squares
    """
    acc = jnp.dot(w_ref[...], xcol_ref[0],
                  preferred_element_type=jnp.float32)      # [cout_pad, band] f32
    conv_ref[0] = acc.astype(conv_ref.dtype)               # bf16 intermediate
    sum_ref[0] = jnp.sum(acc, axis=1, keepdims=True)       # f32 partials (lane reduce)
    sq_ref[0] = jnp.sum(acc * acc, axis=1, keepdims=True)


def _bn_relu_kernel(conv_ref, scale_ref, shift_ref, o_ref):
    """Pass 2: y = max(conv * scale + shift, 0) with per-channel [cout_pad,1] coeffs."""
    y = conv_ref[0].astype(jnp.float32) * scale_ref[...] + shift_ref[...]
    o_ref[0] = jnp.maximum(y, 0.0).astype(o_ref.dtype)


def conv_bn_relu(x_nchw, weight, bias, gamma, beta, *, eps=BN_EPS):
    """Forward of ConvBNRelu. x_nchw: [N, Cin, H, W]; weight: [Cout, Cin, 3, 3]."""
    # TODO(synk): nn.BatchNorm2d's running_mean/running_var buffer update
    # (training-time side effect) is not emitted; the forward output itself
    # (batch-statistic normalization) is fully implemented.
    N, Cin, H, W = x_nchw.shape
    Cout, Cin_w, kH, kW = weight.shape
    assert (kH, kW) == (3, 3) and Cin_w == Cin, "kernel assumes k=3, s=1, p=1"
    hw = H * W
    M = N * hw

    # Conv bias cancels exactly under training-mode BN (batch mean is subtracted),
    # so it is dropped: zero numerical effect, saves one DMA + a full-tensor add.
    del bias

    k_taps = 9 * Cin
    K_p = _round_up(k_taps, 8)        # contraction depth: sublane-aligned only
    cout_pad = _round_up(Cout, 8)     # channels live on sublanes -> 8-aligned

    # ---- glue (plain JAX): folded im2col slab, folded weights ----
    xp = jnp.pad(x_nchw, ((0, 0), (0, 0), (1, 1), (1, 1)))        # spatial pad only
    cols = [xp[:, :, kh:kh + H, kw:kw + W]
            for kh in range(3) for kw in range(3)]                # 9 x [N,Cin,H,W]
    xcol = jnp.concatenate(cols, axis=1).reshape(N, k_taps, hw)   # [N, 9*Cin, H*W]
    xcol = jnp.pad(xcol, ((0, 0), (0, K_p - k_taps), (0, 0))).astype(jnp.bfloat16)

    # weight[o, c, kh, kw] -> [o, (kh, kw, c)] to match xcol's tap ordering.
    w_fold = jnp.transpose(weight, (0, 2, 3, 1)).reshape(Cout, k_taps)
    w_fold = jnp.pad(w_fold, ((0, cout_pad - Cout), (0, K_p - k_taps)))
    w_fold = w_fold.astype(jnp.bfloat16)

    # ---- band sizes from the VMEM budget (double-buffered working set) ----
    w_bytes = 2 * cout_pad * K_p * 2
    p1_row_bytes = 2 * K_p * 2 + 2 * cout_pad * 2 + cout_pad * 4   # x(2buf)+conv(2buf)+f32 acc
    band1 = _pick_band(hw, p1_row_bytes,
                       max(BAND_VMEM_BUDGET - w_bytes, 1 << 20))
    nb1 = hw // band1
    p2_row_bytes = 2 * cout_pad * 2 + 2 * cout_pad * 4             # conv in(2buf) + f32 out(2buf)
    band2 = _pick_band(hw, p2_row_bytes)
    nb2 = hw // band2

    # ---- pass 1: folded conv + per-band per-channel partial statistics ----
    conv, part_sum, part_sq = pl.pallas_call(
        _conv_stats_kernel,
        out_shape=(
            jax.ShapeDtypeStruct((N, cout_pad, hw), jnp.bfloat16),
            jax.ShapeDtypeStruct((N * nb1, cout_pad, 1), jnp.float32),
            jax.ShapeDtypeStruct((N * nb1, cout_pad, 1), jnp.float32),
        ),
        grid_spec=pltpu.PrefetchScalarGridSpec(
            num_scalar_prefetch=0,
            grid=(N, nb1),
            in_specs=[
                pl.BlockSpec((1, K_p, band1), lambda n, b: (n, 0, b)),
                pl.BlockSpec((cout_pad, K_p), lambda n, b: (0, 0)),   # resident weights
            ],
            out_specs=(
                pl.BlockSpec((1, cout_pad, band1), lambda n, b: (n, 0, b)),
                pl.BlockSpec((1, cout_pad, 1), lambda n, b: (n * nb1 + b, 0, 0)),
                pl.BlockSpec((1, cout_pad, 1), lambda n, b: (n * nb1 + b, 0, 0)),
            ),
        ),
        compiler_params=pltpu.CompilerParams(
            dimension_semantics=("parallel", "parallel"),   # no resident accumulator
        ),
    )(xcol, w_fold)

    # ---- per-channel BN coefficients (tiny [cout_pad, 1] math, plain JAX) ----
    # f32 per-band partials reduced here (more accurate than one serial chain).
    ch_sum = jnp.sum(part_sum, axis=0)                       # [cout_pad, 1]
    ch_sq = jnp.sum(part_sq, axis=0)
    mean = ch_sum / M
    var = jnp.maximum(ch_sq / M - mean * mean, 0.0)          # biased batch variance
    inv_std = lax.rsqrt(var + eps)
    gamma_p = jnp.pad(gamma.astype(jnp.float32), (0, cout_pad - Cout)).reshape(cout_pad, 1)
    beta_p = jnp.pad(beta.astype(jnp.float32), (0, cout_pad - Cout)).reshape(cout_pad, 1)
    scale = gamma_p * inv_std                                # gamma / std
    shift = beta_p - mean * scale                            # beta - mean*gamma/std

    # ---- pass 2: normalize + ReLU (one FMA + max per element; both axes parallel) ----
    out = pl.pallas_call(
        _bn_relu_kernel,
        out_shape=jax.ShapeDtypeStruct((N, cout_pad, hw), jnp.float32),
        grid_spec=pltpu.PrefetchScalarGridSpec(
            num_scalar_prefetch=0,
            grid=(N, nb2),
            in_specs=[
                pl.BlockSpec((1, cout_pad, band2), lambda n, b: (n, 0, b)),
                pl.BlockSpec((cout_pad, 1), lambda n, b: (0, 0)),
                pl.BlockSpec((cout_pad, 1), lambda n, b: (0, 0)),
            ],
            out_specs=pl.BlockSpec((1, cout_pad, band2), lambda n, b: (n, 0, b)),
        ),
        compiler_params=pltpu.CompilerParams(
            dimension_semantics=("parallel", "parallel"),
        ),
    )(conv, scale, shift)

    # [N, cout_pad, H*W] -> [N, Cout, H, W]: channel slice is a no-op when
    # Cout % 8 == 0, and the reshape is metadata only (no transpose pass).
    return out[:, :Cout, :].reshape(N, Cout, H, W)


def _reference(x_nchw, weight, bias, gamma, beta, eps=BN_EPS):
    # Independent jax.lax conv + training-mode BN + ReLU graph, mirroring the
    # kernel's intentional precision choices: bf16 conv operands with f32
    # accumulation, and a bf16 rounding of the (bias-free) conv activations at
    # the point where the kernel stores its bf16 intermediate.  The conv bias IS
    # applied here (to the activations and hence to the batch mean), which
    # demonstrates numerically that it cancels under training-mode BN.
    xb = x_nchw.astype(jnp.bfloat16).astype(jnp.float32)
    wb = weight.astype(jnp.bfloat16).astype(jnp.float32)
    conv = lax.conv_general_dilated(
        xb, wb, window_strides=(1, 1), padding=((1, 1), (1, 1)),
        dimension_numbers=("NCHW", "OIHW", "NCHW"),
        precision=lax.Precision.HIGHEST)
    b = bias.reshape(1, -1, 1, 1).astype(jnp.float32)
    conv_b = conv + b                                        # nn.Conv2d output
    mean = jnp.mean(conv_b, axis=(0, 2, 3), keepdims=True)
    var = jnp.mean((conv_b - mean) ** 2, axis=(0, 2, 3), keepdims=True)
    conv_q = conv.astype(jnp.bfloat16).astype(jnp.float32)   # kernel's bf16 intermediate
    y = (conv_q + b - mean) * lax.rsqrt(var + eps) * gamma.reshape(1, -1, 1, 1) \
        + beta.reshape(1, -1, 1, 1)
    return jnp.maximum(y, 0.0)


if __name__ == "__main__":
    key = jax.random.PRNGKey(0)
    k_x, k_w, k_b, k_g, k_be = jax.random.split(key, 5)

    N, Cin, H, W, Cout = 2, 4, 16, 16, 8
    x = jax.random.normal(k_x, (N, Cin, H, W), dtype=jnp.float32)
    weight = jax.random.normal(k_w, (Cout, Cin, 3, 3), dtype=jnp.float32) * 0.2
    bias = jax.random.normal(k_b, (Cout,), dtype=jnp.float32) * 0.1
    gamma = 1.0 + 0.1 * jax.random.normal(k_g, (Cout,), dtype=jnp.float32)
    beta = 0.1 * jax.random.normal(k_be, (Cout,), dtype=jnp.float32)

    out = jax.jit(conv_bn_relu)(x, weight, bias, gamma, beta)
    out = jax.block_until_ready(out)

    ref = _reference(x, weight, bias, gamma, beta)
    assert out.shape == (N, Cout, H, W)
    max_err = float(jnp.max(jnp.abs(out - ref)))
    # Tolerance sized to one bf16 ulp of the stored conv intermediate (the only
    # deliberate low-precision storage step); all other math is f32.
    assert jnp.allclose(out, ref, atol=1e-2, rtol=1e-2), f"max_err={max_err}"

    print("KERNEL_OK")
</pallas_src>

<mosaic_0001>
module attributes {stable_mosaic.version = 11 : i64} {
  func.func @_conv_stats_kernel(%arg0: i32, %arg1: i32, %arg2: memref<1x40x256xbf16, #tpu.memory_space<vmem>>, %arg3: memref<8x40xbf16, #tpu.memory_space<vmem>>, %arg4: memref<1x8x256xbf16, #tpu.memory_space<vmem>>, %arg5: memref<1x8x1xf32, #tpu.memory_space<vmem>>, %arg6: memref<1x8x1xf32, #tpu.memory_space<vmem>>) attributes {dimension_semantics = [#tpu.dimension_semantics<parallel>, #tpu.dimension_semantics<parallel>], iteration_bounds = array<i64: 2, 1>, scalar_prefetch = 0 : i64, scratch_operands = 0 : i64, tpu.core_type = #tpu.core_type<tc>, window_params = [{transform_indices = @transform_0, window_bounds = array<i64: 1, 40, 256>}, {pipeline_mode = #tpu.pipeline_mode<synchronous>, transform_indices = @transform_1, window_bounds = array<i64: 8, 40>}, {transform_indices = @transform_2, window_bounds = array<i64: 1, 8, 256>}, {transform_indices = @transform_3, window_bounds = array<i64: 1, 8, 1>}, {transform_indices = @transform_4, window_bounds = array<i64: 1, 8, 1>}]} {
    %c0 = arith.constant 0 : index
    %c0_0 = arith.constant 0 : index
    %0 = vector.load %arg3[%c0, %c0_0] : memref<8x40xbf16, #tpu.memory_space<vmem>>, vector<8x40xbf16>
    %c0_1 = arith.constant 0 : index
    %c0_2 = arith.constant 0 : index
    %c0_3 = arith.constant 0 : index
    %1 = vector.load %arg2[%c0_1, %c0_2, %c0_3] : memref<1x40x256xbf16, #tpu.memory_space<vmem>>, vector<1x40x256xbf16>
    %2 = vector.shape_cast %1 : vector<1x40x256xbf16> to vector<40x256xbf16>
    %cst = arith.constant dense<0.000000e+00> : vector<8x256xf32>
    %3 = tpu.matmul %0, %2, %cst {dimension_numbers = #tpu.dot_dimension_numbers<[1], [0], [0], [1], [0, 0, 1, 1], [], []>} : vector<8x40xbf16>, vector<40x256xbf16>, vector<8x256xf32> -> vector<8x256xf32>
    %4 = arith.truncf %3 : vector<8x256xf32> to vector<8x256xbf16>
    %c0_4 = arith.constant 0 : index
    %c0_5 = arith.constant 0 : index
    %c0_6 = arith.constant 0 : index
    %5 = vector.load %arg4[%c0_4, %c0_5, %c0_6] : memref<1x8x256xbf16, #tpu.memory_space<vmem>>, vector<1x8x256xbf16>
    %6 = vector.shape_cast %5 : vector<1x8x256xbf16> to vector<8x256xbf16>
    %7 = vector.shape_cast %4 : vector<8x256xbf16> to vector<1x8x256xbf16>
    tpu.vector_store %arg4[%c0_4, %c0_5, %c0_6], %7 {strides = array<i32>} : memref<1x8x256xbf16, #tpu.memory_space<vmem>>, vector<1x8x256xbf16>,
    %cst_7 = arith.constant dense<0.000000e+00> : vector<8xf32>
    %8 = vector.multi_reduction <add>, %3, %cst_7 [1] : vector<8x256xf32> to vector<8xf32>
    %9 = vector.shape_cast %8 : vector<8xf32> to vector<8x1xf32>
    %c0_8 = arith.constant 0 : index
    %c0_9 = arith.constant 0 : index
    %c0_10 = arith.constant 0 : index
    %10 = vector.load %arg5[%c0_8, %c0_9, %c0_10] : memref<1x8x1xf32, #tpu.memory_space<vmem>>, vector<1x8x1xf32>
    %11 = vector.shape_cast %10 : vector<1x8x1xf32> to vector<8x1xf32>
    %12 = vector.shape_cast %9 : vector<8x1xf32> to vector<1x8x1xf32>
    tpu.vector_store %arg5[%c0_8, %c0_9, %c0_10], %12 {strides = array<i32>} : memref<1x8x1xf32, #tpu.memory_space<vmem>>, vector<1x8x1xf32>,
    %13 = arith.mulf %3, %3 : vector<8x256xf32>
    %cst_11 = arith.constant dense<0.000000e+00> : vector<8xf32>
    %14 = vector.multi_reduction <add>, %13, %cst_11 [1] : vector<8x256xf32> to vector<8xf32>
    %15 = vector.shape_cast %14 : vector<8xf32> to vector<8x1xf32>
    %c0_12 = arith.constant 0 : index
    %c0_13 = arith.constant 0 : index
    %c0_14 = arith.constant 0 : index
    %16 = vector.load %arg6[%c0_12, %c0_13, %c0_14] : memref<1x8x1xf32, #tpu.memory_space<vmem>>, vector<1x8x1xf32>
    %17 = vector.shape_cast %16 : vector<1x8x1xf32> to vector<8x1xf32>
    %18 = vector.shape_cast %15 : vector<8x1xf32> to vector<1x8x1xf32>
    tpu.vector_store %arg6[%c0_12, %c0_13, %c0_14], %18 {strides = array<i32>} : memref<1x8x1xf32, #tpu.memory_space<vmem>>, vector<1x8x1xf32>,
    return
  }
  func.func @transform_0(%arg0: i32, %arg1: i32) -> (i32, i32, i32) {
    %c0_i32 = arith.constant 0 : i32
    %c0_i32_0 = arith.constant 0 : i32
    return %arg0, %c0_i32, %arg1 : i32, i32, i32
  }
  func.func @transform_1(%arg0: i32, %arg1: i32) -> (i32, i32) {
    %c0_i32 = arith.constant 0 : i32
    %c0_i32_0 = arith.constant 0 : i32
    %c0_i32_1 = arith.constant 0 : i32
    return %c0_i32, %c0_i32_0 : i32, i32
  }
  func.func @transform_2(%arg0: i32, %arg1: i32) -> (i32, i32, i32) {
    %c0_i32 = arith.constant 0 : i32
    %c0_i32_0 = arith.constant 0 : i32
    return %arg0, %c0_i32, %arg1 : i32, i32, i32
  }
  func.func @transform_3(%arg0: i32, %arg1: i32) -> (i32, i32, i32) {
    %c1_i32 = arith.constant 1 : i32
    %0 = arith.muli %arg0, %c1_i32 : i32
    %1 = arith.addi %0, %arg1 : i32
    %c0_i32 = arith.constant 0 : i32
    %c0_i32_0 = arith.constant 0 : i32
    %c0_i32_1 = arith.constant 0 : i32
    return %1, %c0_i32, %c0_i32_0 : i32, i32, i32
  }
  func.func @transform_4(%arg0: i32, %arg1: i32) -> (i32, i32, i32) {
    %c1_i32 = arith.constant 1 : i32
    %0 = arith.muli %arg0, %c1_i32 : i32
    %1 = arith.addi %0, %arg1 : i32
    %c0_i32 = arith.constant 0 : i32
    %c0_i32_0 = arith.constant 0 : i32
    %c0_i32_1 = arith.constant 0 : i32
    return %1, %c0_i32, %c0_i32_0 : i32, i32, i32
  }
}

module attributes {stable_mosaic.version = 11 : i64} {
  func.func @_bn_relu_kernel(%arg0: i32, %arg1: i32, %arg2: memref<1x8x256xbf16, #tpu.memory_space<vmem>>, %arg3: memref<8x1xf32, #tpu.memory_space<vmem>>, %arg4: memref<8x1xf32, #tpu.memory_space<vmem>>, %arg5: memref<1x8x256xf32, #tpu.memory_space<vmem>>) attributes {dimension_semantics = [#tpu.dimension_semantics<parallel>, #tpu.dimension_semantics<parallel>], iteration_bounds = array<i64: 2, 1>, scalar_prefetch = 0 : i64, scratch_operands = 0 : i64, tpu.core_type = #tpu.core_type<tc>, window_params = [{transform_indices = @transform_0, window_bounds = array<i64: 1, 8, 256>}, {pipeline_mode = #tpu.pipeline_mode<synchronous>, transform_indices = @transform_1, window_bounds = array<i64: 8, 1>}, {pipeline_mode = #tpu.pipeline_mode<synchronous>, transform_indices = @transform_2, window_bounds = array<i64: 8, 1>}, {transform_indices = @transform_3, window_bounds = array<i64: 1, 8, 256>}]} {
    %c0 = arith.constant 0 : index
    %c0_0 = arith.constant 0 : index
    %c0_1 = arith.constant 0 : index
    %0 = vector.load %arg2[%c0, %c0_0, %c0_1] : memref<1x8x256xbf16, #tpu.memory_space<vmem>>, vector<1x8x256xbf16>
    %1 = vector.shape_cast %0 : vector<1x8x256xbf16> to vector<8x256xbf16>
    %2 = arith.extf %1 : vector<8x256xbf16> to vector<8x256xf32>
    %c0_2 = arith.constant 0 : index
    %c0_3 = arith.constant 0 : index
    %3 = vector.load %arg3[%c0_2, %c0_3] : memref<8x1xf32, #tpu.memory_space<vmem>>, vector<8x1xf32>
    %4 = vector.broadcast %3 : vector<8x1xf32> to vector<8x256xf32>
    %5 = arith.mulf %2, %4 : vector<8x256xf32>
    %c0_4 = arith.constant 0 : index
    %c0_5 = arith.constant 0 : index
    %6 = vector.load %arg4[%c0_4, %c0_5] : memref<8x1xf32, #tpu.memory_space<vmem>>, vector<8x1xf32>
    %7 = vector.broadcast %6 : vector<8x1xf32> to vector<8x256xf32>
    %8 = arith.addf %5, %7 : vector<8x256xf32>
    %cst = arith.constant 0.000000e+00 : f32
    %9 = vector.broadcast %cst : f32 to vector<8x256xf32>
    %10 = arith.maximumf %8, %9 : vector<8x256xf32>
    %c0_6 = arith.constant 0 : index
    %c0_7 = arith.constant 0 : index
    %c0_8 = arith.constant 0 : index
    %11 = vector.load %arg5[%c0_6, %c0_7, %c0_8] : memref<1x8x256xf32, #tpu.memory_space<vmem>>, vector<1x8x256xf32>
    %12 = vector.shape_cast %11 : vector<1x8x256xf32> to vector<8x256xf32>
    %13 = vector.shape_cast %10 : vector<8x256xf32> to vector<1x8x256xf32>
    tpu.vector_store %arg5[%c0_6, %c0_7, %c0_8], %13 {strides = array<i32>} : memref<1x8x256xf32, #tpu.memory_space<vmem>>, vector<1x8x256xf32>,
    return
  }
  func.func @transform_0(%arg0: i32, %arg1: i32) -> (i32, i32, i32) {
    %c0_i32 = arith.constant 0 : i32
    %c0_i32_0 = arith.constant 0 : i32
    return %arg0, %c0_i32, %arg1 : i32, i32, i32
  }
  func.func @transform_1(%arg0: i32, %arg1: i32) -> (i32, i32) {
    %c0_i32 = arith.constant 0 : i32
    %c0_i32_0 = arith.constant 0 : i32
    %c0_i32_1 = arith.constant 0 : i32
    return %c0_i32, %c0_i32_0 : i32, i32
  }
  func.func @transform_2(%arg0: i32, %arg1: i32) -> (i32, i32) {
    %c0_i32 = arith.constant 0 : i32
    %c0_i32_0 = arith.constant 0 : i32
    %c0_i32_1 = arith.constant 0 : i32
    return %c0_i32, %c0_i32_0 : i32, i32
  }
  func.func @transform_3(%arg0: i32, %arg1: i32) -> (i32, i32, i32) {
    %c0_i32 = arith.constant 0 : i32
    %c0_i32_0 = arith.constant 0 : i32
    return %arg0, %c0_i32, %arg1 : i32, i32, i32
  }
}

</mosaic_0001>

<llo_original>
// kernel: conv_bn_relu.3
$region0: #{conv_bn_relu.3}
  #allocation0 [shape = 'u32[]', space=smem, size = 0x4, offset = 0x4, fixed_abs, tag = 'smem constant byte address 0x4 - core index']
  #allocation1 [shape = 'u32[144,128]{1,0:T(1,128)}', space=vmem, size = 0x12000, scoped, tag = 'internal scratch']
  %s0 = inlined_call_operand.vmem [shape: bf16[2,8,256], index: 0, kind: input, shape index: {}]
  %s1 = inlined_call_operand.vmem [shape: f32[8,1], index: 1, kind: input, shape index: {}]
  %s2 = inlined_call_operand.vmem [shape: f32[8,1], index: 2, kind: input, shape index: {}]
  %s3 = inlined_call_operand.vmem [shape: f32[2,8,256], index: 3, kind: output, shape index: {}]
  %s4 = sld [smem:[#allocation0]]
  $region45: #{conv_bn_relu.3} parent=0
    _
  %s6 = ssub.s32 1, %s4
  %s7 = scalar_select 0, %s6, %s4
  loop: start=0, step=1, limit=4
  $region2: #{conv_bn_relu.3} parent=0 // loop_pre_header
    _
  $region3: #{conv_bn_relu.3} parent=0 // loop_header
    %s9 = sphi 0, %s13
    %p10 = scmp.ge.s32.totalorder %s9, 4
    %s16 = sphi 0, %s28
    %s17 = sphi 0, %s24
    %s18 = sphi 0, %s16
    %s19 = sphi 0, %s17
    %s20 = sphi 0, %s18
    %s21 = sphi 0, %s19
    %s33 = sphi 0, %s35
    %s36 = sphi 0, %s33
    %s37 = sphi 0, %s36
    %s53 = sphi 0, %s37
    %s57 = sphi 0, %s57
    %s59 = sphi 0, %s57
    %s60 = sphi 0, %s59
    %s74 = sphi 0, %s60
    %s78 = sphi 0, %s78
    %s80 = sphi 0, %s78
    %s81 = sphi 0, %s80
    %s95 = sphi 0, %s81
    %s103 = sphi 0, %s105
    %s106 = sphi 0, %s103
    %s107 = sphi 0, %s106
    %s123 = sphi 0, %s107
  $region4: #{conv_bn_relu.3} parent=0 // loop_header_branch
    %12 = sbr.rel (%p10) target = $region8
  $region5: #{conv_bn_relu.3} parent=0 // loop_body
    %s14 = ssub.s32 %s9, 1
    %s15 = ssub.s32 %s9, 2
    %s22 = sadd.s32 1, %s17
    %p23 = scmp.ge.s32.totalorder %s22, 1
    %s24 = scalar_select %p23, 0, %s22
    %s25 = sadd.s32 1, %s16
    %s26 = scalar_select %p23, %s25, %s16
    %p27 = scmp.ge.s32.totalorder %s26, 2
    %s28 = scalar_select %p27, 0, %s26
    %s29 = ssub.s32 %s16, %s28
    %s30 = ssub.s32 %s17, %s24
    %s31 = sor.u32 %s29, %s30
    %p32 = scmp.eq.s32.totalorder %s31, 0
    %s34 = sadd.s32 %s33, 1
    %s35 = scalar_select %p32, %s33, %s34
    %p38 = pneg %p32
    %p39 = scmp.eq.s32.totalorder %s9, 1
    %p40 = por %p38, %p39
    %p41 = scmp.ne.s32.totalorder %s33, %s36
    %p42 = scmp.eq.s32.totalorder %s9, 0
    %p43 = por %p41, %p42
    %p44 = scmp.ne.s32.totalorder %s33, %s36
    %p45 = scmp.eq.s32.totalorder %s14, 1
    %p46 = por %p44, %p45
    %p47 = scmp.ne.s32.totalorder %s36, %s37
    %p48 = scmp.eq.s32.totalorder %s14, 0
    %p49 = por %p47, %p48
    %p50 = scmp.ne.s32.totalorder %s36, %s37
    %p51 = scmp.eq.s32.totalorder %s15, 1
    %p52 = por %p50, %p51
    %p54 = scmp.ne.s32.totalorder %s37, %s53
    %p55 = scmp.eq.s32.totalorder %s15, 0
    %p56 = por %p54, %p55
    %s58 = sadd.s32 %s57, 1
    %p61 = scmp.eq.s32.totalorder %s9, 1
    %p62 = scmp.ne.s32.totalorder %s57, %s59
    %p63 = scmp.eq.s32.totalorder %s9, 0
    %p64 = por %p62, %p63
    %p65 = scmp.ne.s32.totalorder %s57, %s59
    %p66 = scmp.eq.s32.totalorder %s14, 1
    %p67 = por %p65, %p66
    %p68 = scmp.ne.s32.totalorder %s59, %s60
    %p69 = scmp.eq.s32.totalorder %s14, 0
    %p70 = por %p68, %p69
    %p71 = scmp.ne.s32.totalorder %s59, %s60
    %p72 = scmp.eq.s32.totalorder %s15, 1
    %p73 = por %p71, %p72
    %p75 = scmp.ne.s32.totalorder %s60, %s74
    %p76 = scmp.eq.s32.totalorder %s15, 0
    %p77 = por %p75, %p76
    %s79 = sadd.s32 %s78, 1
    %p82 = scmp.eq.s32.totalorder %s9, 1
    %p83 = scmp.ne.s32.totalorder %s78, %s80
    %p84 = scmp.eq.s32.totalorder %s9, 0
    %p85 = por %p83, %p84
    %p86 = scmp.ne.s32.totalorder %s78, %s80
    %p87 = scmp.eq.s32.totalorder %s14, 1
    %p88 = por %p86, %p87
    %p89 = scmp.ne.s32.totalorder %s80, %s81
    %p90 = scmp.eq.s32.totalorder %s14, 0
    %p91 = por %p89, %p90
    %p92 = scmp.ne.s32.totalorder %s80, %s81
    %p93 = scmp.eq.s32.totalorder %s15, 1
    %p94 = por %p92, %p93
    %p96 = scmp.ne.s32.totalorder %s81, %s95
    %p97 = scmp.eq.s32.totalorder %s15, 0
    %p98 = por %p96, %p97
    %s99 = ssub.s32 %s16, %s28
    %s100 = ssub.s32 %s17, %s24
    %s101 = sor.u32 %s99, %s100
    %p102 = scmp.eq.s32.totalorder %s101, 0
    %s104 = sadd.s32 %s103, 1
    %s105 = scalar_select %p102, %s103, %s104
    %p108 = pneg %p102
    %p109 = scmp.eq.s32.totalorder %s9, 1
    %p110 = por %p108, %p109
    %p111 = scmp.ne.s32.totalorder %s103, %s106
    %p112 = scmp.eq.s32.totalorder %s9, 0
    %p113 = por %p111, %p112
    %p114 = scmp.ne.s32.totalorder %s103, %s106
    %p115 = scmp.eq.s32.totalorder %s14, 1
    %p116 = por %p114, %p115
    %p117 = scmp.ne.s32.totalorder %s106, %s107
    %p118 = scmp.eq.s32.totalorder %s14, 0
    %p119 = por %p117, %p118
    %p120 = scmp.ne.s32.totalorder %s106, %s107
    %p121 = scmp.eq.s32.totalorder %s15, 1
    %p122 = por %p120, %p121
    %p124 = scmp.ne.s32.totalorder %s107, %s123
    %p125 = scmp.eq.s32.totalorder %s15, 0
    %p126 = por %p124, %p125
    %p127 = scmp.le.s32.totalorder 1, %s9
    %p128 = scmp.lt.s32.totalorder %s9, 3
    %p129 = pnand %p127, %p128
    %p130 = pneg %p129
    // Predicated region
    $region9: #{conv_bn_relu.3} parent=5 // pred_check
      _
    $region10: #{conv_bn_relu.3} parent=5 // pred_check_branch
      %132 = sbr.rel (%p129) target = $region12
    $region11: #{conv_bn_relu.3} parent=5 // pred_region
      %s133 = ssub.s32 %s9, 1
      // Predicated region
      $region13: #{conv_bn_relu.3} parent=11 // pred_check
        %p134 = pneg %p70
      $region14: #{conv_bn_relu.3} parent=11 // pred_check_branch
        %136 = sbr.rel (%p134) target = $region16
      $region15: #{conv_bn_relu.3} parent=11 // pred_region
        _
      $region16: #{conv_bn_relu.3} parent=11 // pred_fallthru
        _
      // Predicated region
      $region17: #{conv_bn_relu.3} parent=11 // pred_check
        %p137 = pneg %p91
      $region18: #{conv_bn_relu.3} parent=11 // pred_check_branch
        %139 = sbr.rel (%p137) target = $region20
      $region19: #{conv_bn_relu.3} parent=11 // pred_region
        _
      $region20: #{conv_bn_relu.3} parent=11 // pred_fallthru
        _
    $region12: #{conv_bn_relu.3} parent=5 // pred_fallthru
      _
    %p140 = scmp.lt.s32.totalorder %s9, 2
    // Predicated region
    $region21: #{conv_bn_relu.3} parent=5 // pred_check
      %p141 = pneg %p140
    $region22: #{conv_bn_relu.3} parent=5 // pred_check_branch
      %143 = sbr.rel (%p141) target = $region24
    $region23: #{conv_bn_relu.3} parent=5 // pred_region
      // Predicated region
      $region25: #{conv_bn_relu.3} parent=23 // pred_check
        %p144 = pneg %p43
      $region26: #{conv_bn_relu.3} parent=23 // pred_check_branch
        %146 = sbr.rel (%p144) target = $region28
      $region27: #{conv_bn_relu.3} parent=23 // pred_region
        %s147 = smul.u32 2, %s17
        %p148 = scmp.lt.s32.totalorder %s16, 1
        %s149 = scalar_select %p148, %s16, 1
        %p150 = scmp.lt.s32.totalorder %s147, 1
        %s151 = scalar_select %p150, %s147, 1
        %s152 = smul.addr %s149, 2
        %s153 = sadd.s32 %s151, %s152
        %s154 = smul.addr %s153, 4
        %s155 = scalar_lea.vmem %s0, %s154
        %s156 = smul.u32 2, %s17
      $region28: #{conv_bn_relu.3} parent=23 // pred_fallthru
        _
    $region24: #{conv_bn_relu.3} parent=5 // pred_fallthru
      _
    %p157 = scmp.le.s32.totalorder 1, %s9
    %p158 = scmp.lt.s32.totalorder %s9, 3
    %p159 = pnand %p157, %p158
    %p160 = pneg %p159
    // Predicated region
    $region29: #{conv_bn_relu.3} parent=5 // pred_check
      _
    $region30: #{conv_bn_relu.3} parent=5 // pred_check_branch
      %162 = sbr.rel (%p159) target = $region32
    $region31: #{conv_bn_relu.3} parent=5 // pred_region
      %s163 = ssub.s32 %s9, 1
      %s164 = smul.u32 2, %s19
      %p165 = scmp.lt.s32.totalorder %s18, 1
      %s166 = scalar_select %p165, %s18, 1
      %p167 = scmp.lt.s32.totalorder %s164, 1
      %s168 = scalar_select %p167, %s164, 1
      %s169 = smul.addr %s166, 2
      %s170 = sadd.s32 %s168, %s169
      %s171 = smul.addr %s170, 4
      %s172 = scalar_lea.vmem %s0, %s171
      %p173 = pneg %p49
      %p174 = pneg %p46
      %p175 = pneg %p70
      %p176 = pneg %p67
      %p177 = pneg %p91
      %p178 = pneg %p88
      %p179 = pneg %p119
      %p180 = pneg %p116
      %s181 = smul.u32 2, %s19
      %p182 = scmp.lt.s32.totalorder %s18, 1
      %s183 = scalar_select %p182, %s18, 1
      %p184 = scmp.lt.s32.totalorder %s181, 1
      %s185 = scalar_select %p184, %s181, 1
      %s186 = smul.addr %s183, 2
      %s187 = sadd.s32 %s185, %s186
      %s188 = smul.addr %s187, 8
      %s189 = scalar_lea.vmem %s3, %s188
      %s190 = smul.u32 2, %s19
      %p191 = scmp.lt.s32.totalorder %s18, 1
      %s192 = scalar_select %p191, %s18, 1
      %p193 = scmp.lt.s32.totalorder %s190, 1
      %s194 = scalar_select %p193, %s190, 1
      %s195 = smul.addr %s192, 2
      %s196 = sadd.s32 %s194, %s195
      %s197 = smul.addr %s196, 4
      %s198 = scalar_lea.vmem %s0, %s197
      %s199 = smul.u32 2, %s19
      %s200 = smul.u32 2, %s19
      %p201 = scmp.lt.s32.totalorder %s18, 1
      %s202 = scalar_select %p201, %s18, 1
      %p203 = scmp.lt.s32.totalorder %s200, 1
      %s204 = scalar_select %p203, %s200, 1
      %s205 = smul.addr %s202, 2
      %s206 = sadd.s32 %s204, %s205
      %s207 = smul.addr %s206, 8
      %s208 = scalar_lea.vmem %s3, %s207
      %s209 = smul.u32 2, %s19
      %v210 = vld [vmem:[%s198] sm:$0xff]
      %v211 = vunpack.c.l.bf16 %v210
      %v212 = vunpack.c.h.bf16 %v210
      %v213 = vld [vmem:[%s1] sm:$0xff]
      %215 = vset.pattern.permute.xlu0 0
      %216 = vperm.xlu0 %215, %v213
      %v217 = vpop.permute.xlu0 %216
      %v219 = vmul.f32 %v211, %v217
      %v220 = vmul.f32 %v212, %v217
      %v221 = vld [vmem:[%s2] sm:$0xff]
      %223 = vset.pattern.permute.xlu0 0
      %224 = vperm.xlu0 %223, %v221
      %v225 = vpop.permute.xlu0 %224
      %v227 = vadd.f32 %v219, %v225
      %v228 = vadd.f32 %v220, %v225
      %v229 = vmax.f32 %v227, 0.0
      %v230 = vmax.f32 %v228, 0.0
      %231 = vst [vmem:[%s208] sm:$0xff] %v229
      %232 = vst [vmem:[%s208 + $0x8] sm:$0xff] %v230
      %s233 = smul.u32 2, %s19
      %p234 = scmp.lt.s32.totalorder %s18, 1
      %s235 = scalar_select %p234, %s18, 1
      %p236 = scmp.lt.s32.totalorder %s233, 1
      %s237 = scalar_select %p236, %s233, 1
      %s238 = smul.addr %s235, 2
      %s239 = sadd.s32 %s237, %s238
      %s240 = smul.addr %s239, 8
      %s241 = scalar_lea.vmem %s3, %s240
      // Predicated region
      $region33: #{conv_bn_relu.3} parent=31 // pred_check
        %p242 = pneg %p116
      $region34: #{conv_bn_relu.3} parent=31 // pred_check_branch
        %244 = sbr.rel (%p242) target = $region36
      $region35: #{conv_bn_relu.3} parent=31 // pred_region
        %s245 = smul.u32 2, %s19
      $region36: #{conv_bn_relu.3} parent=31 // pred_fallthru
        _
    $region32: #{conv_bn_relu.3} parent=5 // pred_fallthru
      _
    %p246 = scmp.le.s32.totalorder 2, %s9
    // Predicated region
    $region37: #{conv_bn_relu.3} parent=5 // pred_check
      %p247 = pneg %p246
    $region38: #{conv_bn_relu.3} parent=5 // pred_check_branch
      %249 = sbr.rel (%p247) target = $region40
    $region39: #{conv_bn_relu.3} parent=5 // pred_region
      %s250 = ssub.s32 %s9, 2
      // Predicated region
      $region41: #{conv_bn_relu.3} parent=39 // pred_check
        %p251 = pneg %p122
      $region42: #{conv_bn_relu.3} parent=39 // pred_check_branch
        %253 = sbr.rel (%p251) target = $region44
      $region43: #{conv_bn_relu.3} parent=39 // pred_region
        %s254 = smul.u32 2, %s21
        %p255 = scmp.lt.s32.totalorder %s20, 1
        %s256 = scalar_select %p255, %s20, 1
        %p257 = scmp.lt.s32.totalorder %s254, 1
        %s258 = scalar_select %p257, %s254, 1
        %s259 = smul.addr %s256, 2
        %s260 = sadd.s32 %s258, %s259
        %s261 = smul.addr %s260, 8
        %s262 = scalar_lea.vmem %s3, %s261
      $region44: #{conv_bn_relu.3} parent=39 // pred_fallthru
        _
    $region40: #{conv_bn_relu.3} parent=5 // pred_fallthru
      _
  $region6: #{conv_bn_relu.3} parent=0 // loop_footer
    %s13 = sadd.s32 1, %s9
  $region7: #{conv_bn_relu.3} parent=0 // loop_footer_branch
    %8 = sbr.rel target = $region3
  $region8: #{conv_bn_relu.3} parent=0 // loop_exit
    _

// kernel: conv_bn_relu.2
$region0: #{conv_bn_relu.2}
  #allocation0 [shape = 'u32[]', space=smem, size = 0x4, offset = 0x4, fixed_abs, tag = 'smem constant byte address 0x4 - core index']
  #allocation1 [shape = 'u32[144,128]{1,0:T(1,128)}', space=vmem, size = 0x12000, scoped, tag = 'internal scratch']
  %s0 = inlined_call_operand.vmem [shape: bf16[2,40,256], index: 0, kind: input, shape index: {}]
  %s1 = inlined_call_operand.vmem [shape: bf16[8,40], index: 1, kind: input, shape index: {}]
  %s2 = inlined_call_operand.vmem [shape: bf16[2,8,256], index: 2, kind: output, shape index: {0}]
  %s3 = inlined_call_operand.vmem [shape: f32[2,8,1], index: 3, kind: output, shape index: {1}]
  %s4 = inlined_call_operand.vmem [shape: f32[2,8,1], index: 4, kind: output, shape index: {2}]
  %5 = xla_tuple %s2, %s3, %s4
  %s6 = sld [smem:[#allocation0]]
  $region57: #{conv_bn_relu.2} parent=0
    _
  %s8 = ssub.s32 1, %s6
  %s9 = scalar_select 0, %s8, %s6
  loop: start=0, step=1, limit=4
  $region2: #{conv_bn_relu.2} parent=0 // loop_pre_header
    _
  $region3: #{conv_bn_relu.2} parent=0 // loop_header
    %s11 = sphi 0, %s15
    %p12 = scmp.ge.s32.totalorder %s11, 4
    %s18 = sphi 0, %s30
    %s19 = sphi 0, %s26
    %s20 = sphi 0, %s18
    %s21 = sphi 0, %s19
    %s22 = sphi 0, %s20
    %s23 = sphi 0, %s21
    %s35 = sphi 0, %s37
    %s38 = sphi 0, %s35
    %s39 = sphi 0, %s38
    %s55 = sphi 0, %s39
    %s59 = sphi 0, %s59
    %s61 = sphi 0, %s59
    %s62 = sphi 0, %s61
    %s76 = sphi 0, %s62
    %s84 = sphi 0, %s86
    %s87 = sphi 0, %s84
    %s88 = sphi 0, %s87
    %s104 = sphi 0, %s88
    %s112 = sphi 0, %s114
    %s115 = sphi 0, %s112
    %s116 = sphi 0, %s115
    %s132 = sphi 0, %s116
    %s140 = sphi 0, %s142
    %s143 = sphi 0, %s140
    %s144 = sphi 0, %s143
    %s160 = sphi 0, %s144
  $region4: #{conv_bn_relu.2} parent=0 // loop_header_branch
    %14 = sbr.rel (%p12) target = $region8
  $region5: #{conv_bn_relu.2} parent=0 // loop_body
    %s16 = ssub.s32 %s11, 1
    %s17 = ssub.s32 %s11, 2
    %s24 = sadd.s32 1, %s19
    %p25 = scmp.ge.s32.totalorder %s24, 1
    %s26 = scalar_select %p25, 0, %s24
    %s27 = sadd.s32 1, %s18
    %s28 = scalar_select %p25, %s27, %s18
    %p29 = scmp.ge.s32.totalorder %s28, 2
    %s30 = scalar_select %p29, 0, %s28
    %s31 = ssub.s32 %s18, %s30
    %s32 = ssub.s32 %s19, %s26
    %s33 = sor.u32 %s31, %s32
    %p34 = scmp.eq.s32.totalorder %s33, 0
    %s36 = sadd.s32 %s35, 1
    %s37 = scalar_select %p34, %s35, %s36
    %p40 = pneg %p34
    %p41 = scmp.eq.s32.totalorder %s11, 1
    %p42 = por %p40, %p41
    %p43 = scmp.ne.s32.totalorder %s35, %s38
    %p44 = scmp.eq.s32.totalorder %s11, 0
    %p45 = por %p43, %p44
    %p46 = scmp.ne.s32.totalorder %s35, %s38
    %p47 = scmp.eq.s32.totalorder %s16, 1
    %p48 = por %p46, %p47
    %p49 = scmp.ne.s32.totalorder %s38, %s39
    %p50 = scmp.eq.s32.totalorder %s16, 0
    %p51 = por %p49, %p50
    %p52 = scmp.ne.s32.totalorder %s38, %s39
    %p53 = scmp.eq.s32.totalorder %s17, 1
    %p54 = por %p52, %p53
    %p56 = scmp.ne.s32.totalorder %s39, %s55
    %p57 = scmp.eq.s32.totalorder %s17, 0
    %p58 = por %p56, %p57
    %s60 = sadd.s32 %s59, 1
    %p63 = scmp.eq.s32.totalorder %s11, 1
    %p64 = scmp.ne.s32.totalorder %s59, %s61
    %p65 = scmp.eq.s32.totalorder %s11, 0
    %p66 = por %p64, %p65
    %p67 = scmp.ne.s32.totalorder %s59, %s61
    %p68 = scmp.eq.s32.totalorder %s16, 1
    %p69 = por %p67, %p68
    %p70 = scmp.ne.s32.totalorder %s61, %s62
    %p71 = scmp.eq.s32.totalorder %s16, 0
    %p72 = por %p70, %p71
    %p73 = scmp.ne.s32.totalorder %s61, %s62
    %p74 = scmp.eq.s32.totalorder %s17, 1
    %p75 = por %p73, %p74
    %p77 = scmp.ne.s32.totalorder %s62, %s76
    %p78 = scmp.eq.s32.totalorder %s17, 0
    %p79 = por %p77, %p78
    %s80 = ssub.s32 %s18, %s30
    %s81 = ssub.s32 %s19, %s26
    %s82 = sor.u32 %s80, %s81
    %p83 = scmp.eq.s32.totalorder %s82, 0
    %s85 = sadd.s32 %s84, 1
    %s86 = scalar_select %p83, %s84, %s85
    %p89 = pneg %p83
    %p90 = scmp.eq.s32.totalorder %s11, 1
    %p91 = por %p89, %p90
    %p92 = scmp.ne.s32.totalorder %s84, %s87
    %p93 = scmp.eq.s32.totalorder %s11, 0
    %p94 = por %p92, %p93
    %p95 = scmp.ne.s32.totalorder %s84, %s87
    %p96 = scmp.eq.s32.totalorder %s16, 1
    %p97 = por %p95, %p96
    %p98 = scmp.ne.s32.totalorder %s87, %s88
    %p99 = scmp.eq.s32.totalorder %s16, 0
    %p100 = por %p98, %p99
    %p101 = scmp.ne.s32.totalorder %s87, %s88
    %p102 = scmp.eq.s32.totalorder %s17, 1
    %p103 = por %p101, %p102
    %p105 = scmp.ne.s32.totalorder %s88, %s104
    %p106 = scmp.eq.s32.totalorder %s17, 0
    %p107 = por %p105, %p106
    %s108 = sadd.s32 %s18, %s19
    %s109 = sadd.s32 %s30, %s26
    %s110 = ssub.s32 %s108, %s109
    %p111 = scmp.eq.s32.totalorder %s110, 0
    %s113 = sadd.s32 %s112, 1
    %s114 = scalar_select %p111, %s112, %s113
    %p117 = pneg %p111
    %p118 = scmp.eq.s32.totalorder %s11, 1
    %p119 = por %p117, %p118
    %p120 = scmp.ne.s32.totalorder %s112, %s115
    %p121 = scmp.eq.s32.totalorder %s11, 0
    %p122 = por %p120, %p121
    %p123 = scmp.ne.s32.totalorder %s112, %s115
    %p124 = scmp.eq.s32.totalorder %s16, 1
    %p125 = por %p123, %p124
    %p126 = scmp.ne.s32.totalorder %s115, %s116
    %p127 = scmp.eq.s32.totalorder %s16, 0
    %p128 = por %p126, %p127
    %p129 = scmp.ne.s32.totalorder %s115, %s116
    %p130 = scmp.eq.s32.totalorder %s17, 1
    %p131 = por %p129, %p130
    %p133 = scmp.ne.s32.totalorder %s116, %s132
    %p134 = scmp.eq.s32.totalorder %s17, 0
    %p135 = por %p133, %p134
    %s136 = sadd.s32 %s18, %s19
    %s137 = sadd.s32 %s30, %s26
    %s138 = ssub.s32 %s136, %s137
    %p139 = scmp.eq.s32.totalorder %s138, 0
    %s141 = sadd.s32 %s140, 1
    %s142 = scalar_select %p139, %s140, %s141
    %p145 = pneg %p139
    %p146 = scmp.eq.s32.totalorder %s11, 1
    %p147 = por %p145, %p146
    %p148 = scmp.ne.s32.totalorder %s140, %s143
    %p149 = scmp.eq.s32.totalorder %s11, 0
    %p150 = por %p148, %p149
    %p151 = scmp.ne.s32.totalorder %s140, %s143
    %p152 = scmp.eq.s32.totalorder %s16, 1
    %p153 = por %p151, %p152
    %p154 = scmp.ne.s32.totalorder %s143, %s144
    %p155 = scmp.eq.s32.totalorder %s16, 0
    %p156 = por %p154, %p155
    %p157 = scmp.ne.s32.totalorder %s143, %s144
    %p158 = scmp.eq.s32.totalorder %s17, 1
    %p159 = por %p157, %p158
    %p161 = scmp.ne.s32.totalorder %s144, %s160
    %p162 = scmp.eq.s32.totalorder %s17, 0
    %p163 = por %p161, %p162
    %p164 = scmp.le.s32.totalorder 1, %s11
    %p165 = scmp.lt.s32.totalorder %s11, 3
    %p166 = pnand %p164, %p165
    %p167 = pneg %p166
    // Predicated region
    $region9: #{conv_bn_relu.2} parent=5 // pred_check
      _
    $region10: #{conv_bn_relu.2} parent=5 // pred_check_branch
      %169 = sbr.rel (%p166) target = $region12
    $region11: #{conv_bn_relu.2} parent=5 // pred_region
      %s170 = ssub.s32 %s11, 1
      // Predicated region
      $region13: #{conv_bn_relu.2} parent=11 // pred_check
        %p171 = pneg %p72
      $region14: #{conv_bn_relu.2} parent=11 // pred_check_branch
        %173 = sbr.rel (%p171) target = $region16
      $region15: #{conv_bn_relu.2} parent=11 // pred_region
        _
      $region16: #{conv_bn_relu.2} parent=11 // pred_fallthru
        _
    $region12: #{conv_bn_relu.2} parent=5 // pred_fallthru
      _
    %p174 = scmp.lt.s32.totalorder %s11, 2
    // Predicated region
    $region17: #{conv_bn_relu.2} parent=5 // pred_check
      %p175 = pneg %p174
    $region18: #{conv_bn_relu.2} parent=5 // pred_check_branch
      %177 = sbr.rel (%p175) target = $region20
    $region19: #{conv_bn_relu.2} parent=5 // pred_region
      // Predicated region
      $region21: #{conv_bn_relu.2} parent=19 // pred_check
        %p178 = pneg %p45
      $region22: #{conv_bn_relu.2} parent=19 // pred_check_branch
        %180 = sbr.rel (%p178) target = $region24
      $region23: #{conv_bn_relu.2} parent=19 // pred_region
        %s181 = smul.u32 2, %s19
        %p182 = scmp.lt.s32.totalorder %s18, 1
        %s183 = scalar_select %p182, %s18, 1
        %p184 = scmp.lt.s32.totalorder %s181, 1
        %s185 = scalar_select %p184, %s181, 1
        %s186 = smul.addr %s183, 10
        %s187 = sadd.s32 %s185, %s186
        %s188 = smul.addr %s187, 4
        %s189 = scalar_lea.vmem %s0, %s188
        %s190 = smul.u32 2, %s19
      $region24: #{conv_bn_relu.2} parent=19 // pred_fallthru
        _
    $region20: #{conv_bn_relu.2} parent=5 // pred_fallthru
      _
    %p191 = scmp.le.s32.totalorder 1, %s11
    %p192 = scmp.lt.s32.totalorder %s11, 3
    %p193 = pnand %p191, %p192
    %p194 = pneg %p193
    // Predicated region
    $region25: #{conv_bn_relu.2} parent=5 // pred_check
      _
    $region26: #{conv_bn_relu.2} parent=5 // pred_check_branch
      %196 = sbr.rel (%p193) target = $region28
    $region27: #{conv_bn_relu.2} parent=5 // pred_region
      %s197 = ssub.s32 %s11, 1
      %s198 = smul.u32 2, %s21
      %p199 = scmp.lt.s32.totalorder %s20, 1
      %s200 = scalar_select %p199, %s20, 1
      %p201 = scmp.lt.s32.totalorder %s198, 1
      %s202 = scalar_select %p201, %s198, 1
      %s203 = smul.addr %s200, 10
      %s204 = sadd.s32 %s202, %s203
      %s205 = smul.addr %s204, 4
      %s206 = scalar_lea.vmem %s0, %s205
      %p207 = pneg %p51
      %p208 = pneg %p48
      %p209 = pneg %p72
      %p210 = pneg %p69
      %p211 = pneg %p100
      %p212 = pneg %p97
      %s213 = smul.u32 2, %s21
      %p214 = scmp.lt.s32.totalorder %s20, 1
      %s215 = scalar_select %p214, %s20, 1
      %p216 = scmp.lt.s32.totalorder %s213, 1
      %s217 = scalar_select %p216, %s213, 1
      %s218 = smul.addr %s215, 2
      %s219 = sadd.s32 %s217, %s218
      %s220 = smul.addr %s219, 4
      %s221 = scalar_lea.vmem %s2, %s220
      %p222 = pneg %p128
      %p223 = pneg %p125
      %s224 = sadd.s32 %s20, %s21
      %p225 = scmp.lt.s32.totalorder %s224, 1
      %s226 = scalar_select %p225, %s224, 1
      %s227 = smul.addr %s226, 8
      %s228 = scalar_lea.vmem %s3, %s227
      %p229 = pneg %p156
      %p230 = pneg %p153
      %s231 = sadd.s32 %s20, %s21
      %p232 = scmp.lt.s32.totalorder %s231, 1
      %s233 = scalar_select %p232, %s231, 1
      %s234 = smul.addr %s233, 8
      %s235 = scalar_lea.vmem %s4, %s234
      %s236 = smul.u32 2, %s21
      %p237 = scmp.lt.s32.totalorder %s20, 1
      %s238 = scalar_select %p237, %s20, 1
      %p239 = scmp.lt.s32.totalorder %s236, 1
      %s240 = scalar_select %p239, %s236, 1
      %s241 = smul.addr %s238, 10
      %s242 = sadd.s32 %s240, %s241
      %s243 = smul.addr %s242, 4
      %s244 = scalar_lea.vmem %s0, %s243
      %s245 = smul.u32 2, %s21
      %s246 = smul.u32 2, %s21
      %p247 = scmp.lt.s32.totalorder %s20, 1
      %s248 = scalar_select %p247, %s20, 1
      %p249 = scmp.lt.s32.totalorder %s246, 1
      %s250 = scalar_select %p249, %s246, 1
      %s251 = smul.addr %s248, 2
      %s252 = sadd.s32 %s250, %s251
      %s253 = smul.addr %s252, 4
      %s254 = scalar_lea.vmem %s2, %s253
      %s255 = smul.u32 2, %s21
      %s256 = sadd.s32 %s20, %s21
      %p257 = scmp.lt.s32.totalorder %s256, 1
      %s258 = scalar_select %p257, %s256, 1
      %s259 = smul.addr %s258, 8
      %s260 = scalar_lea.vmem %s3, %s259
      %s261 = sadd.s32 %s20, %s21
      %s262 = sadd.s32 %s20, %s21
      %p263 = scmp.lt.s32.totalorder %s262, 1
      %s264 = scalar_select %p263, %s262, 1
      %s265 = smul.addr %s264, 8
      %s266 = scalar_lea.vmem %s4, %s265
      %s267 = sadd.s32 %s20, %s21
      %v269 = vld [vmem:[%s1] sm:$0xf]
      %v270 = vld [vmem:[%s244] sm:$0xff]
      %v271 = vld [vmem:[%s244 + $0x8] sm:$0xff]
      %v272 = vld [vmem:[%s244 + $0x10] sm:$0xff]
      %v273 = vld [vmem:[%s244 + $0x18] sm:$0xff]
      %v274 = vld [vmem:[%s244 + $0x20] sm:$0xff]
      %v280 = vunpack.c.l.b16 %v270
      %v281 = vunpack.c.h.b16 %v270
      %v282 = vunpack.c.l.b16 %v271
      %v283 = vunpack.c.h.b16 %v271
      %v284 = vunpack.c.l.b16 %v272
      %v285 = vunpack.c.h.b16 %v272
      %v286 = vunpack.c.l.b16 %v273
      %v287 = vunpack.c.h.b16 %v273
      %v288 = vunpack.c.l.b16 %v274
      %v289 = vunpack.c.h.b16 %v274
      %v290 = vpack.c.b16 %v282, %v280
      %v291 = vpack.c.b16 %v283, %v281
      %v292 = vpack.c.b16 %v286, %v284
      %v293 = vpack.c.b16 %v287, %v285
      %v294 = vpack.c.b16 %v288, %v288
      %v295 = vpack.c.b16 %v289, %v289
      %vm300 = vcmask 326656
      %v302 = vsel %vm300, %v269, 0
      %vm304 = vcmask 1043456
      %v306 = vsel %vm304, %v294, 0
      %v309 = vsel %vm304, %v295, 0
      %311 = vmatprep.subr.bf16.mxu0 %v291
      %312 = vmatpush1.bf16.msra.mxu0 %v290
      %313 = vmatprep.subr.bf16.mxu0 %v293
      %314 = vmatpush1.bf16.msra.mxu0 %v292
      %315 = vmatprep.subr.bf16.mxu0 %v309
      %316 = vmatpush1.bf16.msra.mxu0 %v306
      %317 = vmatprep.subr.bf16.mxu0 0
      %318 = vmatpush1.bf16.msra.mxu0 0
      %319 = vmatprep.subr.bf16.mxu0 0
      %320 = vmatpush1.bf16.msra.mxu0 0
      %321 = vmatprep.subr.bf16.mxu0 0
      %322 = vmatpush1.bf16.msra.mxu0 0
      %323 = vmatprep.subr.bf16.mxu0 0
      %324 = vmatpush1.bf16.msra.mxu0 0
      %325 = vmatprep.subr.bf16.mxu0 0
      %326 = vmatpush1.bf16.msra.mxu0 0
      %327 = vmatprep.subr.bf16.mxu0 0
      %328 = vmatpush1.bf16.msra.mxu0 0
      %329 = vmatprep.subr.bf16.mxu0 0
      %330 = vmatpush1.bf16.msra.mxu0 0
      %331 = vmatprep.subr.bf16.mxu0 0
      %332 = vmatpush1.bf16.msra.mxu0 0
      %333 = vmatprep.subr.bf16.mxu0 0
      %334 = vmatpush1.bf16.msra.mxu0 0
      %335 = vmatprep.subr.bf16.mxu0 0
      %336 = vmatpush1.bf16.msra.mxu0 0
      %337 = vmatprep.subr.bf16.mxu0 0
      %338 = vmatpush1.bf16.msra.mxu0 0
      %339 = vmatprep.subr.bf16.mxu0 0
      %340 = vmatpush1.bf16.msra.mxu0 0
      %341 = vmatprep.subr.bf16.mxu0 0
      %342 = vmatpush1.bf16.msra.mxu0 0
      %343 = vmatprep.mubr.bf16.mxu0 0
      %344 = vmatmul.mubr.bf16.gmra.mrb[0].mxu0 %v302
      %v345 = vpop.f32.mrb[0].mxu0
      %v346 = vadd.f32 0.0, %v345
      %v347 = vpop.f32.mrb[0].mxu0
      %v348 = vadd.f32 0.0, %v347
      %v349 = vpop.f32.mrb[0].mxu0
      %v350 = vpop.f32.mrb[0].mxu0
      %351 = vdwg.mxu0
      %v352 = vpack.c.bf16 %v346, %v346
      %v353 = vpack.c.bf16 %v348, %v348
      %v356 = vunpack.c.l.b16 %v352
      %v357 = vunpack.c.l.b16 %v353
      %v358 = vpack.c.b16 %v357, %v356
      %360 = vst [vmem:[%s254] sm:$0xff] %v358
      %v361 = vadd.f32 %v346, %v348
      %362 = vadd.xlane.f32.xlu0 %v361
      %v363 = vpop.xlane.xlu0 %362
      %vm364 = vcmask 7168
      %365 = vst.msk [vmem:[%s260] sm:$0xff] %vm364, %v363
      %v366 = vmul.f32 %v346, %v346
      %v367 = vmul.f32 %v348, %v348
      %v368 = vadd.f32 %v366, %v367
      %369 = vadd.xlane.f32.xlu0 %v368
      %v370 = vpop.xlane.xlu0 %369
      %371 = vst.msk [vmem:[%s266] sm:$0xff] %vm364, %v370
      %s372 = smul.u32 2, %s21
      %p373 = scmp.lt.s32.totalorder %s20, 1
      %s374 = scalar_select %p373, %s20, 1
      %p375 = scmp.lt.s32.totalorder %s372, 1
      %s376 = scalar_select %p375, %s372, 1
      %s377 = smul.addr %s374, 2
      %s378 = sadd.s32 %s376, %s377
      %s379 = smul.addr %s378, 4
      %s380 = scalar_lea.vmem %s2, %s379
      %s381 = sadd.s32 %s20, %s21
      %p382 = scmp.lt.s32.totalorder %s381, 1
      %s383 = scalar_select %p382, %s381, 1
      %s384 = smul.addr %s383, 8
      %s385 = scalar_lea.vmem %s3, %s384
      %s386 = sadd.s32 %s20, %s21
      %p387 = scmp.lt.s32.totalorder %s386, 1
      %s388 = scalar_select %p387, %s386, 1
      %s389 = smul.addr %s388, 8
      %s390 = scalar_lea.vmem %s4, %s389
      // Predicated region
      $region29: #{conv_bn_relu.2} parent=27 // pred_check
        %p391 = pneg %p97
      $region30: #{conv_bn_relu.2} parent=27 // pred_check_branch
        %393 = sbr.rel (%p391) target = $region32
      $region31: #{conv_bn_relu.2} parent=27 // pred_region
        %s394 = smul.u32 2, %s21
      $region32: #{conv_bn_relu.2} parent=27 // pred_fallthru
        _
      // Predicated region
      $region33: #{conv_bn_relu.2} parent=27 // pred_check
        %p395 = pneg %p125
      $region34: #{conv_bn_relu.2} parent=27 // pred_check_branch
        %397 = sbr.rel (%p395) target = $region36
      $region35: #{conv_bn_relu.2} parent=27 // pred_region
        %s398 = sadd.s32 %s20, %s21
      $region36: #{conv_bn_relu.2} parent=27 // pred_fallthru
        _
      // Predicated region
      $region37: #{conv_bn_relu.2} parent=27 // pred_check
        %p399 = pneg %p153
      $region38: #{conv_bn_relu.2} parent=27 // pred_check_branch
        %401 = sbr.rel (%p399) target = $region40
      $region39: #{conv_bn_relu.2} parent=27 // pred_region
        %s402 = sadd.s32 %s20, %s21
      $region40: #{conv_bn_relu.2} parent=27 // pred_fallthru
        _
    $region28: #{conv_bn_relu.2} parent=5 // pred_fallthru
      _
    %p403 = scmp.le.s32.totalorder 2, %s11
    // Predicated region
    $region41: #{conv_bn_relu.2} parent=5 // pred_check
      %p404 = pneg %p403
    $region42: #{conv_bn_relu.2} parent=5 // pred_check_branch
      %406 = sbr.rel (%p404) target = $region44
    $region43: #{conv_bn_relu.2} parent=5 // pred_region
      %s407 = ssub.s32 %s11, 2
      // Predicated region
      $region45: #{conv_bn_relu.2} parent=43 // pred_check
        %p408 = pneg %p103
      $region46: #{conv_bn_relu.2} parent=43 // pred_check_branch
        %410 = sbr.rel (%p408) target = $region48
      $region47: #{conv_bn_relu.2} parent=43 // pred_region
        %s411 = smul.u32 2, %s23
        %p412 = scmp.lt.s32.totalorder %s22, 1
        %s413 = scalar_select %p412, %s22, 1
        %p414 = scmp.lt.s32.totalorder %s411, 1
        %s415 = scalar_select %p414, %s411, 1
        %s416 = smul.addr %s413, 2
        %s417 = sadd.s32 %s415, %s416
        %s418 = smul.addr %s417, 4
        %s419 = scalar_lea.vmem %s2, %s418
      $region48: #{conv_bn_relu.2} parent=43 // pred_fallthru
        _
      // Predicated region
      $region49: #{conv_bn_relu.2} parent=43 // pred_check
        %p420 = pneg %p131
      $region50: #{conv_bn_relu.2} parent=43 // pred_check_branch
        %422 = sbr.rel (%p420) target = $region52
      $region51: #{conv_bn_relu.2} parent=43 // pred_region
        %s423 = sadd.s32 %s22, %s23
        %p424 = scmp.lt.s32.totalorder %s423, 1
        %s425 = scalar_select %p424, %s423, 1
        %s426 = smul.addr %s425, 8
        %s427 = scalar_lea.vmem %s3, %s426
      $region52: #{conv_bn_relu.2} parent=43 // pred_fallthru
        _
      // Predicated region
      $region53: #{conv_bn_relu.2} parent=43 // pred_check
        %p428 = pneg %p159
      $region54: #{conv_bn_relu.2} parent=43 // pred_check_branch
        %430 = sbr.rel (%p428) target = $region56
      $region55: #{conv_bn_relu.2} parent=43 // pred_region
        %s431 = sadd.s32 %s22, %s23
        %p432 = scmp.lt.s32.totalorder %s431, 1
        %s433 = scalar_select %p432, %s431, 1
        %s434 = smul.addr %s433, 8
        %s435 = scalar_lea.vmem %s4, %s434
      $region56: #{conv_bn_relu.2} parent=43 // pred_fallthru
        _
    $region44: #{conv_bn_relu.2} parent=5 // pred_fallthru
      _
  $region6: #{conv_bn_relu.2} parent=0 // loop_footer
    %s15 = sadd.s32 1, %s11
  $region7: #{conv_bn_relu.2} parent=0 // loop_footer_branch
    %10 = sbr.rel target = $region3
  $region8: #{conv_bn_relu.2} parent=0 // loop_exit
    _

</llo_original>
